<compile_context>
chip_gen: v7x
topology: tpu7x:2x2x1
jax: 0.10.0
libtpu: 0.0.40
codegen_flags: <defaults>
</compile_context>

<pallas_src>
import jax
import jax.numpy as jnp
from jax import lax
from jax.experimental import pallas as pl
from jax.experimental.pallas import tpu as pltpu

LANES = 128
TARGET_BLOCK_ROWS = 2048              # (2048, 128) f32 tile = 1 MiB / input / step
PAD_NEG = -1e4                        # softplus(PAD_NEG) == 0 exactly in f32
VMEM_LIMIT_BYTES = 32 * 1024 * 1024   # explicit scoped-VMEM limit, safe on v5e/v6e/v7x


def _cdiv(a, b):
    return -(-a // b)


def _round_up(a, m):
    return _cdiv(a, m) * m


def _min_sublanes(dtype):
    """Minimum second-minor block multiple for a dtype: (8,128) f32, (16,128) bf16, (32,128) int8."""
    return {4: 8, 2: 16, 1: 32}.get(jnp.dtype(dtype).itemsize, 8)


def _accumulate(x, y, acc_g, acc_a, acc_b):
    """Add this block's per-(sublane, lane) partial sums into the accumulators.

    x, y are (block_rows, LANES) float32.  Invalid elements must already carry
    (x, y) == (PAD_NEG, 0), which makes all three contributions exactly zero.
    """
    # Numerically stable softplus(x) = max(x, 0) + log1p(exp(-|x|)).
    sp_pos = jnp.maximum(x, 0.0) + jnp.log1p(jnp.exp(-jnp.abs(x)))
    yp = y * sp_pos
    g = y                    # -> sum(gt)
    a = yp - y * x           # y * softplus(-x)
    b = sp_pos - yp          # (1 - y) * softplus(x)
    rows = x.shape[0]
    if rows % 8 == 0:
        # Pure VPU vreg adds; cross-sublane/lane reduce deferred to finalize.
        acc_g[...] += jnp.sum(g.reshape(-1, 8, LANES), axis=0)
        acc_a[...] += jnp.sum(a.reshape(-1, 8, LANES), axis=0)
        acc_b[...] += jnp.sum(b.reshape(-1, 8, LANES), axis=0)
    else:
        # Only reachable for a tiny single-block input whose row count is not
        # a multiple of 8 (block == full array dim): efficiency is irrelevant.
        acc_g[0:1, :] += jnp.sum(g, axis=0, keepdims=True)
        acc_a[0:1, :] += jnp.sum(a, axis=0, keepdims=True)
        acc_b[0:1, :] += jnp.sum(b, axis=0, keepdims=True)


def _make_kernel(*, block_rows, steps, rows_data, num_blocks, num_chunks):
    all_blocks_full = (rows_data % block_rows == 0) and (num_chunks * steps == num_blocks)

    def kernel(pred_ref, gt_ref, out_ref, acc_g, acc_a, acc_b):
        i = pl.program_id(0)          # chunk ("parallel")
        j = pl.program_id(1)          # step within chunk ("arbitrary")

        @pl.when(j == 0)
        def _init():
            acc_g[...] = jnp.zeros_like(acc_g)
            acc_a[...] = jnp.zeros_like(acc_a)
            acc_b[...] = jnp.zeros_like(acc_b)

        x = pred_ref[...].astype(jnp.float32)
        y = gt_ref[...].astype(jnp.float32)

        if all_blocks_full:
            _accumulate(x, y, acc_g, acc_a, acc_b)
        else:
            blk = i * steps + j                              # logical block id
            is_full = (blk + 1) * block_rows <= rows_data

            @pl.when(is_full)
            def _full():
                _accumulate(x, y, acc_g, acc_a, acc_b)

            @pl.when(jnp.logical_not(is_full))
            def _partial():
                # Partial last real block, or the dummy trailing block on the
                # 2-chunk grid when num_blocks is odd (valid_rows <= 0 there,
                # so everything is masked to an exact-zero contribution).
                valid_rows = rows_data - blk * block_rows
                row = lax.broadcasted_iota(jnp.int32, (block_rows, LANES), 0)
                m = row < valid_rows
                _accumulate(jnp.where(m, x, PAD_NEG), jnp.where(m, y, 0.0),
                            acc_g, acc_a, acc_b)

        @pl.when(j == pl.num_programs(1) - 1)
        def _finalize():
            sg = jnp.sum(acc_g[...])
            sa = jnp.sum(acc_a[...])
            sb = jnp.sum(acc_b[...])
            lane = lax.broadcasted_iota(jnp.int32, (8, LANES), 1)
            out_ref[0] = jnp.where(
                lane == 0, sg,
                jnp.where(lane == 1, sa,
                          jnp.where(lane == 2, sb, 0.0)))

    return kernel


def bbce_with_logit_loss(pred, gt, *, block_rows=None):
    """Balanced BCEWithLogitLoss; pred/gt can be any (equal) shape."""
    assert pred.shape == gt.shape
    n_total = int(pred.size)
    assert n_total > 0

    p_flat = pred.reshape(-1)
    g_flat = gt.reshape(-1)

    # Zero-copy path whenever the element count is lane-divisible (the common
    # case for NCHW inputs).  Only a non-128-divisible count needs a pad-to-128
    # copy; padded elements carry (PAD_NEG, 0) and contribute exactly zero.
    # TODO(synk): a 1-D-block kernel variant would make even this path copy-free.
    if n_total % LANES:
        pad = LANES - n_total % LANES
        p_flat = jnp.pad(p_flat, (0, pad), constant_values=PAD_NEG)
        g_flat = jnp.pad(g_flat, (0, pad), constant_values=0)

    rows_data = p_flat.size // LANES                 # == cdiv(n_total, 128)
    sub = max(_min_sublanes(pred.dtype), _min_sublanes(gt.dtype))

    if block_rows is None:
        block_rows = TARGET_BLOCK_ROWS
    if block_rows >= rows_data:
        block_rows = rows_data                       # single block == full dim (always legal)
    else:
        block_rows = _round_up(block_rows, sub)
        if block_rows >= rows_data:
            block_rows = rows_data

    num_blocks = _cdiv(rows_data, block_rows)
    # Two "parallel" chunks whenever there is more than one block, so a
    # dual-TensorCore part (v7x) can split the row range across cores.  On
    # single-TC chips (v5e/v6e) the extra chunk costs one tiny epilogue and at
    # most one fully-masked dummy block -- negligible vs. the HBM stream.
    num_chunks = 2 if num_blocks >= 2 else 1
    steps = _cdiv(num_blocks, num_chunks)

    p2 = p_flat.reshape(rows_data, LANES)            # free reshape, native dtype
    g2 = g_flat.reshape(rows_data, LANES)

    if num_chunks * steps == num_blocks:
        def in_map(i, j):
            return (i * steps + j, 0)
    else:
        def in_map(i, j):
            # Clamp the single dummy trailing block onto the last real block;
            # the kernel masks its contribution to exactly zero.
            return (jnp.minimum(i * steps + j, num_blocks - 1), 0)

    kernel = _make_kernel(block_rows=block_rows, steps=steps,
                          rows_data=rows_data, num_blocks=num_blocks,
                          num_chunks=num_chunks)

    cost = pl.CostEstimate(
        flops=12 * n_total,
        transcendentals=2 * n_total,                 # exp + log1p per element
        bytes_accessed=int(p2.size) * p2.dtype.itemsize
        + int(g2.size) * g2.dtype.itemsize
        + num_chunks * 8 * LANES * 4)

    partials = pl.pallas_call(
        kernel,
        out_shape=jax.ShapeDtypeStruct((num_chunks, 8, LANES), jnp.float32),
        grid_spec=pltpu.PrefetchScalarGridSpec(
            num_scalar_prefetch=0,
            grid=(num_chunks, steps),
            in_specs=[
                pl.BlockSpec((block_rows, LANES), in_map),
                pl.BlockSpec((block_rows, LANES), in_map),
            ],
            out_specs=pl.BlockSpec((1, 8, LANES), lambda i, j: (i, 0, 0)),
            scratch_shapes=[pltpu.VMEM((8, LANES), jnp.float32)] * 3,
        ),
        compiler_params=pltpu.CompilerParams(
            dimension_semantics=("parallel", "arbitrary"),
            vmem_limit_bytes=VMEM_LIMIT_BYTES),
        cost_estimate=cost,
    )(p2, g2)

    # Combine per-chunk partial sums (lanes 0..2 of row 0 hold S_g, S_a, S_b).
    s_g = jnp.sum(partials[:, 0, 0])
    s_a = jnp.sum(partials[:, 0, 1])
    s_b = jnp.sum(partials[:, 0, 2])

    # O(1) scalar glue matching the torch module exactly.
    eps = jnp.float32(1e-10)
    n = jnp.float32(n_total)
    count_pos = s_g + eps
    count_neg = n - s_g                  # == sum(1 - gt)
    ratio = count_neg / count_pos        # pos_weight
    w_neg = count_pos / (count_pos + count_neg)
    loss = w_neg * (ratio * s_a + s_b) / n
    return loss


def _bbce_reference(pred, gt):
    """Pure-JAX reference mirroring the PyTorch module."""
    eps = 1e-10
    x = pred.astype(jnp.float32)
    y = gt.astype(jnp.float32)
    count_pos = jnp.sum(y) + eps
    count_neg = jnp.sum(1.0 - y)
    ratio = count_neg / count_pos
    w_neg = count_pos / (count_pos + count_neg)
    sp_pos = jnp.maximum(x, 0.0) + jnp.log1p(jnp.exp(-jnp.abs(x)))
    per_elem = ratio * y * (sp_pos - x) + (1.0 - y) * sp_pos
    return w_neg * jnp.mean(per_elem)


if __name__ == "__main__":
    key = jax.random.PRNGKey(0)
    k1, k2, k3, k4 = jax.random.split(key, 4)

    # NCHW logits + binary ground truth: batch=2, channels=4, spatial=16x16.
    pred = jax.random.normal(k1, (2, 4, 16, 16), dtype=jnp.float32)
    gt = (jax.random.uniform(k2, (2, 4, 16, 16)) > 0.5).astype(jnp.float32)

    loss_fn = jax.jit(bbce_with_logit_loss)
    loss = jax.block_until_ready(loss_fn(pred, gt))
    ref = jax.block_until_ready(_bbce_reference(pred, gt))
    assert jnp.allclose(loss, ref, rtol=1e-5, atol=1e-6), (loss, ref)

    # Exercise the tiled path: 2 parallel chunks, a partial last block and one
    # fully-masked dummy block (block_rows=8 over 20 rows x 128 lanes).
    pred2 = jax.random.normal(k3, (2, 4, 16, 20), dtype=jnp.float32)
    gt2 = (jax.random.uniform(k4, (2, 4, 16, 20)) > 0.5).astype(jnp.float32)
    loss2 = jax.block_until_ready(bbce_with_logit_loss(pred2, gt2, block_rows=8))
    ref2 = _bbce_reference(pred2, gt2)
    assert jnp.allclose(loss2, ref2, rtol=1e-5, atol=1e-6), (loss2, ref2)

    # Exercise the rare non-128-divisible path (pad-to-lane, zero-contribution values).
    pred3 = jax.random.normal(k1, (2, 4, 15, 15), dtype=jnp.float32)
    gt3 = (jax.random.uniform(k2, (2, 4, 15, 15)) > 0.5).astype(jnp.float32)
    loss3 = jax.block_until_ready(bbce_with_logit_loss(pred3, gt3))
    ref3 = _bbce_reference(pred3, gt3)
    assert jnp.allclose(loss3, ref3, rtol=1e-5, atol=1e-6), (loss3, ref3)

    print("KERNEL_OK")
</pallas_src>

<mosaic_0001>
module attributes {stable_mosaic.version = 11 : i64} {
  func.func @kernel(%arg0: i32, %arg1: i32, %arg2: memref<16x128xf32, #tpu.memory_space<vmem>>, %arg3: memref<16x128xf32, #tpu.memory_space<vmem>>, %arg4: memref<1x8x128xf32, #tpu.memory_space<vmem>>, %arg5: memref<8x128xf32, #tpu.memory_space<vmem>>, %arg6: memref<8x128xf32, #tpu.memory_space<vmem>>, %arg7: memref<8x128xf32, #tpu.memory_space<vmem>>) attributes {dimension_semantics = [#tpu.dimension_semantics<parallel>, #tpu.dimension_semantics<arbitrary>], iteration_bounds = array<i64: 1, 1>, scalar_prefetch = 0 : i64, scratch_operands = 3 : i64, tpu.core_type = #tpu.core_type<tc>, window_params = [{transform_indices = @transform_0, window_bounds = array<i64: 16, 128>}, {transform_indices = @transform_1, window_bounds = array<i64: 16, 128>}, {transform_indices = @transform_2, window_bounds = array<i64: 1, 8, 128>}]} {
    %c0_i32 = arith.constant 0 : i32
    %0 = arith.cmpi eq, %arg1, %c0_i32 : i32
    %1 = arith.extui %0 : i1 to i32
    %c0_i32_0 = arith.constant 0 : i32
    %2 = arith.cmpi ne, %1, %c0_i32_0 : i32
    scf.if %2 {
      %cst_22 = arith.constant 0.000000e+00 : f32
      %35 = vector.broadcast %cst_22 : f32 to vector<8x128xf32>
      %c0_23 = arith.constant 0 : index
      %c0_24 = arith.constant 0 : index
      %36 = vector.load %arg5[%c0_23, %c0_24] : memref<8x128xf32, #tpu.memory_space<vmem>>, vector<8x128xf32>
      tpu.vector_store %arg5[%c0_23, %c0_24], %35 {strides = array<i32>} : memref<8x128xf32, #tpu.memory_space<vmem>>, vector<8x128xf32>,
      %cst_25 = arith.constant 0.000000e+00 : f32
      %37 = vector.broadcast %cst_25 : f32 to vector<8x128xf32>
      %c0_26 = arith.constant 0 : index
      %c0_27 = arith.constant 0 : index
      %38 = vector.load %arg6[%c0_26, %c0_27] : memref<8x128xf32, #tpu.memory_space<vmem>>, vector<8x128xf32>
      tpu.vector_store %arg6[%c0_26, %c0_27], %37 {strides = array<i32>} : memref<8x128xf32, #tpu.memory_space<vmem>>, vector<8x128xf32>,
      %cst_28 = arith.constant 0.000000e+00 : f32
      %39 = vector.broadcast %cst_28 : f32 to vector<8x128xf32>
      %c0_29 = arith.constant 0 : index
      %c0_30 = arith.constant 0 : index
      %40 = vector.load %arg7[%c0_29, %c0_30] : memref<8x128xf32, #tpu.memory_space<vmem>>, vector<8x128xf32>
      tpu.vector_store %arg7[%c0_29, %c0_30], %39 {strides = array<i32>} : memref<8x128xf32, #tpu.memory_space<vmem>>, vector<8x128xf32>,
    } else {
    }
    %c0 = arith.constant 0 : index
    %c0_1 = arith.constant 0 : index
    %3 = vector.load %arg2[%c0, %c0_1] : memref<16x128xf32, #tpu.memory_space<vmem>>, vector<16x128xf32>
    %c0_2 = arith.constant 0 : index
    %c0_3 = arith.constant 0 : index
    %4 = vector.load %arg3[%c0_2, %c0_3] : memref<16x128xf32, #tpu.memory_space<vmem>>, vector<16x128xf32>
    %cst = arith.constant 0.000000e+00 : f32
    %5 = vector.broadcast %cst : f32 to vector<16x128xf32>
    %6 = arith.maximumf %3, %5 : vector<16x128xf32>
    %7 = math.absf %3 : vector<16x128xf32>
    %cst_4 = arith.constant 0.000000e+00 : f32
    %8 = vector.broadcast %cst_4 : f32 to vector<16x128xf32>
    %9 = arith.subf %8, %7 : vector<16x128xf32>
    %10 = math.exp %9 : vector<16x128xf32>
    %11 = math.log1p %10 : vector<16x128xf32>
    %12 = arith.addf %6, %11 : vector<16x128xf32>
    %13 = arith.mulf %4, %12 : vector<16x128xf32>
    %14 = arith.mulf %4, %3 : vector<16x128xf32>
    %15 = arith.subf %13, %14 : vector<16x128xf32>
    %16 = arith.subf %12, %13 : vector<16x128xf32>
    %c0_5 = arith.constant 0 : index
    %c0_6 = arith.constant 0 : index
    %17 = vector.load %arg5[%c0_5, %c0_6] : memref<8x128xf32, #tpu.memory_space<vmem>>, vector<8x128xf32>
    %18 = vector.shape_cast %4 : vector<16x128xf32> to vector<2x8x128xf32>
    %cst_7 = arith.constant dense<0.000000e+00> : vector<8x128xf32>
    %19 = vector.multi_reduction <add>, %18, %cst_7 [0] : vector<2x8x128xf32> to vector<8x128xf32>
    %20 = arith.addf %17, %19 : vector<8x128xf32>
    %c0_8 = arith.constant 0 : index
    %c0_9 = arith.constant 0 : index
    %21 = vector.load %arg5[%c0_8, %c0_9] : memref<8x128xf32, #tpu.memory_space<vmem>>, vector<8x128xf32>
    tpu.vector_store %arg5[%c0_8, %c0_9], %20 {strides = array<i32>} : memref<8x128xf32, #tpu.memory_space<vmem>>, vector<8x128xf32>,
    %c0_10 = arith.constant 0 : index
    %c0_11 = arith.constant 0 : index
    %22 = vector.load %arg6[%c0_10, %c0_11] : memref<8x128xf32, #tpu.memory_space<vmem>>, vector<8x128xf32>
    %23 = vector.shape_cast %15 : vector<16x128xf32> to vector<2x8x128xf32>
    %cst_12 = arith.constant dense<0.000000e+00> : vector<8x128xf32>
    %24 = vector.multi_reduction <add>, %23, %cst_12 [0] : vector<2x8x128xf32> to vector<8x128xf32>
    %25 = arith.addf %22, %24 : vector<8x128xf32>
    %c0_13 = arith.constant 0 : index
    %c0_14 = arith.constant 0 : index
    %26 = vector.load %arg6[%c0_13, %c0_14] : memref<8x128xf32, #tpu.memory_space<vmem>>, vector<8x128xf32>
    tpu.vector_store %arg6[%c0_13, %c0_14], %25 {strides = array<i32>} : memref<8x128xf32, #tpu.memory_space<vmem>>, vector<8x128xf32>,
    %c0_15 = arith.constant 0 : index
    %c0_16 = arith.constant 0 : index
    %27 = vector.load %arg7[%c0_15, %c0_16] : memref<8x128xf32, #tpu.memory_space<vmem>>, vector<8x128xf32>
    %28 = vector.shape_cast %16 : vector<16x128xf32> to vector<2x8x128xf32>
    %cst_17 = arith.constant dense<0.000000e+00> : vector<8x128xf32>
    %29 = vector.multi_reduction <add>, %28, %cst_17 [0] : vector<2x8x128xf32> to vector<8x128xf32>
    %30 = arith.addf %27, %29 : vector<8x128xf32>
    %c0_18 = arith.constant 0 : index
    %c0_19 = arith.constant 0 : index
    %31 = vector.load %arg7[%c0_18, %c0_19] : memref<8x128xf32, #tpu.memory_space<vmem>>, vector<8x128xf32>
    tpu.vector_store %arg7[%c0_18, %c0_19], %30 {strides = array<i32>} : memref<8x128xf32, #tpu.memory_space<vmem>>, vector<8x128xf32>,
    %c0_i32_20 = arith.constant 0 : i32
    %32 = arith.cmpi eq, %arg1, %c0_i32_20 : i32
    %33 = arith.extui %32 : i1 to i32
    %c0_i32_21 = arith.constant 0 : i32
    %34 = arith.cmpi ne, %33, %c0_i32_21 : i32
    scf.if %34 {
      %c0_22 = arith.constant 0 : index
      %c0_23 = arith.constant 0 : index
      %35 = vector.load %arg5[%c0_22, %c0_23] : memref<8x128xf32, #tpu.memory_space<vmem>>, vector<8x128xf32>
      %36 = vector.shape_cast %35 : vector<8x128xf32> to vector<1x8x128xf32>
      %cst_24 = arith.constant dense<0.000000e+00> : vector<1xf32>
      %37 = vector.multi_reduction <add>, %36, %cst_24 [1, 2] : vector<1x8x128xf32> to vector<1xf32>
      %38 = vector.shape_cast %37 : vector<1xf32> to vector<1x1x1xf32>
      %39 = vector.extract %38[0, 0, 0] : f32 from vector<1x1x1xf32>
      %c0_25 = arith.constant 0 : index
      %c0_26 = arith.constant 0 : index
      %40 = vector.load %arg6[%c0_25, %c0_26] : memref<8x128xf32, #tpu.memory_space<vmem>>, vector<8x128xf32>
      %41 = vector.shape_cast %40 : vector<8x128xf32> to vector<1x8x128xf32>
      %cst_27 = arith.constant dense<0.000000e+00> : vector<1xf32>
      %42 = vector.multi_reduction <add>, %41, %cst_27 [1, 2] : vector<1x8x128xf32> to vector<1xf32>
      %43 = vector.shape_cast %42 : vector<1xf32> to vector<1x1x1xf32>
      %44 = vector.extract %43[0, 0, 0] : f32 from vector<1x1x1xf32>
      %c0_28 = arith.constant 0 : index
      %c0_29 = arith.constant 0 : index
      %45 = vector.load %arg7[%c0_28, %c0_29] : memref<8x128xf32, #tpu.memory_space<vmem>>, vector<8x128xf32>
      %46 = vector.shape_cast %45 : vector<8x128xf32> to vector<1x8x128xf32>
      %cst_30 = arith.constant dense<0.000000e+00> : vector<1xf32>
      %47 = vector.multi_reduction <add>, %46, %cst_30 [1, 2] : vector<1x8x128xf32> to vector<1xf32>
      %48 = vector.shape_cast %47 : vector<1xf32> to vector<1x1x1xf32>
      %49 = vector.extract %48[0, 0, 0] : f32 from vector<1x1x1xf32>
      %50 = tpu.iota {dimensions = array<i32: 1>} : vector<8x128xi32>
      %c0_i32_31 = arith.constant 0 : i32
      %51 = vector.broadcast %c0_i32_31 : i32 to vector<8x128xi32>
      %52 = arith.cmpi eq, %50, %51 : vector<8x128xi32>
      %c1_i32 = arith.constant 1 : i32
      %53 = vector.broadcast %c1_i32 : i32 to vector<8x128xi32>
      %54 = arith.cmpi eq, %50, %53 : vector<8x128xi32>
      %c2_i32 = arith.constant 2 : i32
      %55 = vector.broadcast %c2_i32 : i32 to vector<8x128xi32>
      %56 = arith.cmpi eq, %50, %55 : vector<8x128xi32>
      %cst_32 = arith.constant 0.000000e+00 : f32
      %57 = vector.broadcast %49 : f32 to vector<8x128xf32>
      %58 = vector.broadcast %cst_32 : f32 to vector<8x128xf32>
      %59 = arith.select %56, %57, %58 : vector<8x128xi1>, vector<8x128xf32>
      %60 = vector.broadcast %44 : f32 to vector<8x128xf32>
      %61 = arith.select %54, %60, %59 : vector<8x128xi1>, vector<8x128xf32>
      %62 = vector.broadcast %39 : f32 to vector<8x128xf32>
      %63 = arith.select %52, %62, %61 : vector<8x128xi1>, vector<8x128xf32>
      %c0_33 = arith.constant 0 : index
      %c0_34 = arith.constant 0 : index
      %c0_35 = arith.constant 0 : index
      %64 = vector.load %arg4[%c0_33, %c0_34, %c0_35] : memref<1x8x128xf32, #tpu.memory_space<vmem>>, vector<1x8x128xf32>
      %65 = vector.shape_cast %64 : vector<1x8x128xf32> to vector<8x128xf32>
      %66 = vector.shape_cast %63 : vector<8x128xf32> to vector<1x8x128xf32>
      tpu.vector_store %arg4[%c0_33, %c0_34, %c0_35], %66 {strides = array<i32>} : memref<1x8x128xf32, #tpu.memory_space<vmem>>, vector<1x8x128xf32>,
    } else {
    }
    return
  }
  func.func @transform_0(%arg0: i32, %arg1: i32) -> (i32, i32) {
    %c1_i32 = arith.constant 1 : i32
    %0 = arith.muli %arg0, %c1_i32 : i32
    %1 = arith.addi %0, %arg1 : i32
    %c0_i32 = arith.constant 0 : i32
    %c0_i32_0 = arith.constant 0 : i32
    return %1, %c0_i32 : i32, i32
  }
  func.func @transform_1(%arg0: i32, %arg1: i32) -> (i32, i32) {
    %c1_i32 = arith.constant 1 : i32
    %0 = arith.muli %arg0, %c1_i32 : i32
    %1 = arith.addi %0, %arg1 : i32
    %c0_i32 = arith.constant 0 : i32
    %c0_i32_0 = arith.constant 0 : i32
    return %1, %c0_i32 : i32, i32
  }
  func.func @transform_2(%arg0: i32, %arg1: i32) -> (i32, i32, i32) {
    %c0_i32 = arith.constant 0 : i32
    %c0_i32_0 = arith.constant 0 : i32
    %c0_i32_1 = arith.constant 0 : i32
    return %arg0, %c0_i32, %c0_i32_0 : i32, i32, i32
  }
}

</mosaic_0001>

<llo_original>
// kernel: bbce_with_logit_loss.1
$region0: #{bbce_with_logit_loss.1}
  #allocation0 [shape = 'u32[]', space=smem, size = 0x4, offset = 0x4, fixed_abs, tag = 'smem constant byte address 0x4 - core index']
  #allocation1 [shape = 'u32[144,128]{1,0:T(1,128)}', space=vmem, size = 0x12000, scoped, tag = 'internal scratch']
  #allocation2 [shape = 'f32[8,128]{1,0:T(8,128)}', space=vmem, size = 0x1000, scoped, tag = 'scratch operand']
  #allocation3 [shape = 'f32[8,128]{1,0:T(8,128)}', space=vmem, size = 0x1000, scoped, tag = 'scratch operand']
  #allocation4 [shape = 'f32[8,128]{1,0:T(8,128)}', space=vmem, size = 0x1000, scoped, tag = 'scratch operand']
  %s0 = inlined_call_operand.vmem [shape: f32[16,128], index: 0, kind: input, shape index: {}]
  %s1 = inlined_call_operand.vmem [shape: f32[16,128], index: 1, kind: input, shape index: {}]
  %s2 = inlined_call_operand.vmem [shape: f32[1,8,128], index: 2, kind: output, shape index: {}]
  %s3 = sld [smem:[#allocation0]]
  $region26: #{bbce_with_logit_loss.1} parent=0
    _
  %s5 = ssub.s32 1, %s3
  %s6 = scalar_select 0, %s5, %s3
  // Predicated region
  $region2: #{bbce_with_logit_loss.1} parent=0 // pred_check
    _
  $region3: #{bbce_with_logit_loss.1} parent=0 // pred_check_branch
    %8 = sbr.rel (0) target = $region5
  $region4: #{bbce_with_logit_loss.1} parent=0 // pred_region
    %s9 = sadd.s32 0, 0
    %s10 = smul.u32 2, %s9
    %p11 = scmp.lt.s32.totalorder %s10, 1
    %s12 = scalar_select %p11, %s10, 1
    %s13 = smul.addr %s12, 8
    %s14 = scalar_lea.vmem %s0, %s13
    %s15 = sadd.s32 0, 0
    %s16 = smul.u32 2, %s15
  $region5: #{bbce_with_logit_loss.1} parent=0 // pred_fallthru
    _
  // Predicated region
  $region6: #{bbce_with_logit_loss.1} parent=0 // pred_check
    _
  $region7: #{bbce_with_logit_loss.1} parent=0 // pred_check_branch
    %18 = sbr.rel (0) target = $region9
  $region8: #{bbce_with_logit_loss.1} parent=0 // pred_region
    %s19 = sadd.s32 0, 0
    %s20 = smul.u32 2, %s19
    %p21 = scmp.lt.s32.totalorder %s20, 1
    %s22 = scalar_select %p21, %s20, 1
    %s23 = smul.addr %s22, 8
    %s24 = scalar_lea.vmem %s1, %s23
    %s25 = sadd.s32 0, 0
    %s26 = smul.u32 2, %s25
  $region9: #{bbce_with_logit_loss.1} parent=0 // pred_fallthru
    _
  %s27 = sadd.s32 0, 0
  %s28 = smul.u32 2, %s27
  %p29 = scmp.lt.s32.totalorder %s28, 1
  %s30 = scalar_select %p29, %s28, 1
  %s31 = smul.addr %s30, 8
  %s32 = scalar_lea.vmem %s0, %s31
  %s33 = sadd.s32 0, 0
  %s34 = smul.u32 2, %s33
  %p35 = scmp.lt.s32.totalorder %s34, 1
  %s36 = scalar_select %p35, %s34, 1
  %s37 = smul.addr %s36, 8
  %s38 = scalar_lea.vmem %s1, %s37
  %s39 = sadd.s32 0, 0
  %s40 = smul.u32 2, %s39
  %p41 = scmp.lt.s32.totalorder %s40, 1
  %s42 = scalar_select %p41, %s40, 1
  %s43 = smul.addr %s42, 8
  %s44 = scalar_lea.vmem %s0, %s43
  %s45 = sadd.s32 0, 0
  %s46 = smul.u32 2, %s45
  %s47 = sadd.s32 0, 0
  %s48 = smul.u32 2, %s47
  %p49 = scmp.lt.s32.totalorder %s48, 1
  %s50 = scalar_select %p49, %s48, 1
  %s51 = smul.addr %s50, 8
  %s52 = scalar_lea.vmem %s1, %s51
  %s53 = sadd.s32 0, 0
  %s54 = smul.u32 2, %s53
  %p55 = scmp.eq.s32.totalorder 0, 0
  // Predicated region
  $region10: #{bbce_with_logit_loss.1} parent=0 // pred_check
    %p56 = pneg %p55
  $region11: #{bbce_with_logit_loss.1} parent=0 // pred_check_branch
    %58 = sbr.rel (%p56) target = $region13
  $region12: #{bbce_with_logit_loss.1} parent=0 // pred_region
    %59 = vst [vmem:[#allocation2] sm:$0xff] 0.0
    %60 = vst [vmem:[#allocation3] sm:$0xff] 0.0
    %61 = vst [vmem:[#allocation4] sm:$0xff] 0.0
  $region13: #{bbce_with_logit_loss.1} parent=0 // pred_fallthru
    _
  %v62 = vld [vmem:[%s44] sm:$0xff]
  %v63 = vld [vmem:[%s44 + $0x8] sm:$0xff]
  %v64 = vld [vmem:[%s52] sm:$0xff]
  %v65 = vld [vmem:[%s52 + $0x8] sm:$0xff]
  %v66 = vmax.f32 %v62, 0.0
  %v67 = vmax.f32 %v63, 0.0
  %v68 = vand.u32 2147483647, %v62
  %v69 = vand.u32 2147483647, %v63
  %v70 = vsub.f32 0.0, %v68
  %v71 = vsub.f32 0.0, %v69
  %v72 = vmul.f32 %v70, 1.442695
  %v73 = vpow.pop %v72
  %v74 = vmul.f32 %v71, 1.442695
  %v75 = vpow.pop %v74
  %v76 = vadd.f32 %v73, 1.0
  %v77 = vlog2.pop %v76
  %v78 = vmul.f32 %v77, 0.6931472
  %v79 = vmul.f32 -0.5, %v73
  %v80 = vadd.f32 %v79, 1.0
  %v81 = vmul.f32 %v80, %v73
  %v82 = vand.u32 2147483647, %v73
  %vm83 = vcmp.lt.f32.partialorder %v82, 0.0004427343
  %v84 = vsel %vm83, %v81, %v78
  %v85 = vadd.f32 %v75, 1.0
  %v86 = vlog2.pop %v85
  %v87 = vmul.f32 %v86, 0.6931472
  %v88 = vmul.f32 -0.5, %v75
  %v89 = vadd.f32 %v88, 1.0
  %v90 = vmul.f32 %v89, %v75
  %v91 = vand.u32 2147483647, %v75
  %vm92 = vcmp.lt.f32.partialorder %v91, 0.0004427343
  %v93 = vsel %vm92, %v90, %v87
  %v94 = vadd.f32 %v66, %v84
  %v95 = vadd.f32 %v67, %v93
  %v96 = vmul.f32 %v64, %v94
  %v97 = vmul.f32 %v65, %v95
  %v98 = vmul.f32 %v64, %v62
  %v99 = vmul.f32 %v65, %v63
  %v100 = vsub.f32 %v96, %v98
  %v101 = vsub.f32 %v97, %v99
  %v102 = vsub.f32 %v94, %v96
  %v103 = vsub.f32 %v95, %v97
  %v104 = vld [vmem:[#allocation2] sm:$0xff]
  %v105 = vadd.f32 %v64, %v65
  %v106 = vadd.f32 %v104, %v105
  %107 = vst [vmem:[#allocation2] sm:$0xff] %v106
  %v108 = vld [vmem:[#allocation3] sm:$0xff]
  %v109 = vadd.f32 %v100, %v101
  %v110 = vadd.f32 %v108, %v109
  %111 = vst [vmem:[#allocation3] sm:$0xff] %v110
  %v112 = vld [vmem:[#allocation4] sm:$0xff]
  %v113 = vadd.f32 %v102, %v103
  %v114 = vadd.f32 %v112, %v113
  %115 = vst [vmem:[#allocation4] sm:$0xff] %v114
  // Predicated region
  $region14: #{bbce_with_logit_loss.1} parent=0 // pred_check
    %p116 = pneg %p55
  $region15: #{bbce_with_logit_loss.1} parent=0 // pred_check_branch
    %118 = sbr.rel (%p116) target = $region17
  $region16: #{bbce_with_logit_loss.1} parent=0 // pred_region
    %v119 = vld [vmem:[#allocation2] sm:$0xff]
    %120 = vadd.xlane.f32.xlu0 %v119
    %v121 = vpop.xlane.xlu0 %120
    %v122 = vrot.slane %v121, 4
    %v123 = vadd.f32 %v121, %v122
    %v124 = vrot.slane %v123, 2
    %v125 = vadd.f32 %v123, %v124
    %v126 = vrot.slane %v125, 1
    %v127 = vadd.f32 %v125, %v126
    %s128 = vtos %v127
    %v129 = vld [vmem:[#allocation3] sm:$0xff]
    %130 = vadd.xlane.f32.xlu0 %v129
    %v131 = vpop.xlane.xlu0 %130
    %v132 = vrot.slane %v131, 4
    %v133 = vadd.f32 %v131, %v132
    %v134 = vrot.slane %v133, 2
    %v135 = vadd.f32 %v133, %v134
    %v136 = vrot.slane %v135, 1
    %v137 = vadd.f32 %v135, %v136
    %s138 = vtos %v137
    %v139 = vld [vmem:[#allocation4] sm:$0xff]
    %140 = vadd.xlane.f32.xlu0 %v139
    %v141 = vpop.xlane.xlu0 %140
    %v142 = vrot.slane %v141, 4
    %v143 = vadd.f32 %v141, %v142
    %v144 = vrot.slane %v143, 2
    %v145 = vadd.f32 %v143, %v144
    %v146 = vrot.slane %v145, 1
    %v147 = vadd.f32 %v145, %v146
    %s148 = vtos %v147
    %v149 = vlaneseq
    %v150 = vand.u32 %v149, 127
    %vm151 = vcmp.eq.s32.totalorder %v150, 0
    %vm152 = vcmp.eq.s32.totalorder %v150, 1
    %vm153 = vcmp.eq.s32.totalorder %v150, 2
    %v154 = vstv %s148
    %v155 = vsel %vm153, %v154, 0.0
    %v156 = vstv %s138
    %v157 = vsel %vm152, %v156, %v155
    %v158 = vstv %s128
    %v159 = vsel %vm151, %v158, %v157
    %160 = vst [vmem:[%s2] sm:$0xff] %v159
  $region17: #{bbce_with_logit_loss.1} parent=0 // pred_fallthru
    _
  // Predicated region
  $region18: #{bbce_with_logit_loss.1} parent=0 // pred_check
    _
  $region19: #{bbce_with_logit_loss.1} parent=0 // pred_check_branch
    %162 = sbr.rel (0) target = $region21
  $region20: #{bbce_with_logit_loss.1} parent=0 // pred_region
    _
  $region21: #{bbce_with_logit_loss.1} parent=0 // pred_fallthru
    _
  // Predicated region
  $region22: #{bbce_with_logit_loss.1} parent=0 // pred_check
    _
  $region23: #{bbce_with_logit_loss.1} parent=0 // pred_check_branch
    %164 = sbr.rel (0) target = $region25
  $region24: #{bbce_with_logit_loss.1} parent=0 // pred_region
    _
  $region25: #{bbce_with_logit_loss.1} parent=0 // pred_fallthru
    _

</llo_original>
